<compile_context>
chip_gen: v5e
topology: v5e:2x2
jax: 0.10.0
libtpu: 0.0.40
codegen_flags: <defaults>
</compile_context>

<pallas_src>
import functools

import jax
import jax.numpy as jnp
from jax import lax
from jax.experimental import pallas as pl
from jax.experimental.pallas import tpu as pltpu


def _gram_partial_kernel(f_ref, g_ref, *, hw, t_hw, kps, needs_mask, cast_bf16):
    """Grid = (n_shards, N, kps) with the HW reduction (k) innermost.

    f_ref : (C, t_hw)    feature tile, native dtype (last real tile may be ragged)
    g_ref : (1, 1, C, C) f32 un-normalized partial Gram for this (shard, batch);
                         resident across the k axis and used as the accumulator.
    """
    s = pl.program_id(0)
    k = pl.program_id(2)

    @pl.when(k == 0)
    def _():
        g_ref[...] = jnp.zeros_like(g_ref)

    F = f_ref[...]
    if needs_mask:
        # Global (intended) k-tile index for this shard.  Columns beyond HW --
        # either the ragged tail of the last real tile or a fully out-of-range
        # duplicate tile of the last shard (clamped in the index_map) -- are
        # zeroed so they contribute nothing to F @ F^T.  Cheap VPU filler.
        kg = s * kps + k
        col0 = kg * t_hw
        col = lax.broadcasted_iota(jnp.int32, F.shape, dimension=1)
        F = jnp.where(col < (hw - col0), F, jnp.zeros_like(F))
    if cast_bf16:
        # Compute-bound (large-C) f32 layers: single-pass bf16 MXU, f32 accum.
        F = F.astype(jnp.bfloat16)

    # A @ A^T on the MXU: contract the last dim of BOTH operands so no XLU
    # transpose of the (C, t_hw) tile is required; accumulate in f32.
    partial = lax.dot_general(
        F, F,
        dimension_numbers=(((1,), (1,)), ((), ())),
        preferred_element_type=jnp.float32,
    )
    g_ref[...] += partial[None, None, :, :]


def _vmem_policy():
    """Returns (feature double-buffer budget, scoped-VMEM cap) per generation."""
    cap = None
    try:
        cap = getattr(pltpu.get_tpu_info(), "vmem_capacity_bytes", None)
    except Exception:
        cap = None
    if cap is None:
        cap = 64 << 20                       # conservative (v7x-sized) fallback
    if cap >= (96 << 20):                    # v5e / v6e: 128 MiB VMEM per core
        return 40 << 20, min(96 << 20, (cap * 3) // 4)
    return 14 << 20, (cap * 4) // 5          # v7x: 64 MiB -> ~51 MiB scoped cap


def _choose_hw_tile(hw, c, itemsize, tile_budget_bytes):
    """Largest HW tile whose double-buffered (C, t_hw) feature block fits the
    budget.  Full HW if it fits (full-dim blocks are always layout-legal);
    otherwise a multiple of 128, rebalanced so the masked tail is < 128 cols."""
    if 2 * c * hw * itemsize <= tile_budget_bytes:
        return hw
    max_cols = max(128, (tile_budget_bytes // (2 * c * itemsize)) // 128 * 128)
    if hw <= max_cols:
        return hw
    num_k = -(-hw // max_cols)
    t = -(-hw // num_k)
    return ((t + 127) // 128) * 128


def style_layer_sums(features_nchw, target_gram, *, tile_budget_bytes=None):
    """Returns (sum((G - T)^2), sum(|G - T|)) summed over the batch, where G is
    the normalized Gram matrix of `features_nchw` ((N, C, H, W)).

    For best performance feed bf16 features produced upstream (do not cast
    here -- a wrapper-side cast is its own HBM round trip)."""
    N, C, H, W = features_nchw.shape
    HW = H * W
    f = features_nchw.reshape(N, C, HW)
    inv_hwc = 1.0 / float(H * W * C)

    budget, vmem_cap = _vmem_policy()
    if tile_budget_bytes is not None:        # test / tuning override
        budget = tile_budget_bytes
    itemsize = jnp.dtype(f.dtype).itemsize
    t_hw = _choose_hw_tile(HW, C, itemsize, budget)
    num_k_total = -(-HW // t_hw)

    # For the common N==1 style-transfer case, split the HW reduction into two
    # partial-Gram accumulators on a leading "parallel" axis so both v7x
    # TensorCores stream features; on single-core parts it just serializes.
    n_shards = 2 if (N == 1 and num_k_total >= 2) else 1
    kps = -(-num_k_total // n_shards)        # k tiles per shard
    needs_mask = (n_shards * kps * t_hw != HW)
    cast_bf16 = (jnp.dtype(f.dtype) == jnp.float32) and (C >= 256)

    # Scoped-VMEM limit from the real footprint: double-buffered feature tile
    # + (double-buffered) resident (C, C) f32 output block + Mosaic headroom.
    fbuf = 2 * C * t_hw * itemsize
    gbuf = 2 * C * C * 4
    vmem_limit = int(min(vmem_cap, max(16 << 20, fbuf + gbuf + (4 << 20))))

    kernel = functools.partial(
        _gram_partial_kernel, hw=HW, t_hw=t_hw, kps=kps,
        needs_mask=needs_mask, cast_bf16=cast_bf16)

    def f_index(s, n, k):
        # Clamp duplicate tiles of the last shard in-bounds; they are fully
        # masked to zero inside the kernel.
        kg = jnp.minimum(s * kps + k, num_k_total - 1)
        return (n, 0, kg)

    gram_partials = pl.pallas_call(
        kernel,
        out_shape=jax.ShapeDtypeStruct((n_shards, N, C, C), jnp.float32),
        grid_spec=pltpu.PrefetchScalarGridSpec(
            num_scalar_prefetch=0,
            grid=(n_shards, N, kps),
            in_specs=[pl.BlockSpec((pl.Squeezed(), C, t_hw), f_index)],
            out_specs=pl.BlockSpec((1, 1, C, C), lambda s, n, k: (s, n, 0, 0)),
        ),
        compiler_params=pltpu.CompilerParams(
            dimension_semantics=("parallel", "parallel", "arbitrary"),
            vmem_limit_bytes=vmem_limit,
        ),
    )(f)

    # Tiny O(N*C^2) epilogue in plain JAX: combine shard partials, normalize,
    # diff against the target Gram, and reduce to the two per-layer scalars.
    G = gram_partials.sum(axis=0) * inv_hwc
    diff = G - target_gram.astype(jnp.float32)
    return jnp.sum(diff * diff), jnp.sum(jnp.abs(diff))


def style_loss(style_weight, style_weight_ratio, features, style_targets,
               style_layers):
    """JAX/Pallas equivalent of StyleLoss.forward."""
    loss = jnp.float32(0.0)
    for layer in style_layers:
        sq, ab = style_layer_sums(features[layer], style_targets[layer])
        loss = loss + sq / (ab + 1e-8) * style_weight_ratio[layer]
    return loss * style_weight


# ---- pure-JAX reference (for sanity check) ---------------------------------
def _gram_ref(features_nchw):
    N, C, H, W = features_nchw.shape
    F = features_nchw.reshape(N, C, H * W).astype(jnp.float32)
    G = jnp.einsum("nck,ndk->ncd", F, F)
    return G / (H * W * C)


def _style_loss_ref(style_weight, style_weight_ratio, features, style_targets,
                    style_layers):
    loss = jnp.float32(0.0)
    for layer in style_layers:
        G = _gram_ref(features[layer])
        diff = G - style_targets[layer]
        loss = loss + (jnp.sum(diff ** 2) /
                       (jnp.sum(jnp.abs(diff)) + 1e-8) *
                       style_weight_ratio[layer])
    return loss * style_weight


if __name__ == "__main__":
    key = jax.random.PRNGKey(0)
    k1, k2, k3, k4, k5 = jax.random.split(key, 5)

    style_layers = ["conv1", "conv2"]
    # Deterministic synthetic "cnn features" of the current image and of the
    # style image (from which targets are derived), at small NCHW shapes.
    features = {
        "conv1": jax.random.normal(k1, (2, 4, 16, 16), dtype=jnp.float32),
        "conv2": jax.random.normal(k2, (2, 8, 8, 8), dtype=jnp.float32),
    }
    style_image_features = {
        "conv1": jax.random.normal(k3, (2, 4, 16, 16), dtype=jnp.float32),
        "conv2": jax.random.normal(k4, (2, 8, 8, 8), dtype=jnp.float32),
    }
    # style_targets are precomputed Gram matrices (input-prep glue in plain JAX).
    style_targets = {l: _gram_ref(style_image_features[l]) for l in style_layers}

    style_weight = 1e3
    style_weight_ratio = {"conv1": 0.6, "conv2": 0.4}

    out = style_loss(style_weight, style_weight_ratio, features,
                     style_targets, style_layers)
    out = jax.block_until_ready(out)

    ref = _style_loss_ref(style_weight, style_weight_ratio, features,
                          style_targets, style_layers)
    assert jnp.allclose(out, ref, rtol=1e-4, atol=1e-4), (out, ref)

    # Extra self-check exercising the in-kernel tail mask, the clamped
    # duplicate tile and the 2-way HW shard (N=1): force a tiny tile budget so
    # HW=320 is tiled as 3 x 128-col tiles split across 2 shards.
    xf = jax.random.normal(k5, (1, 8, 16, 20), dtype=jnp.float32)
    tgt = _gram_ref(xf) * 0.5
    sq, ab = style_layer_sums(xf, tgt, tile_budget_bytes=8192)
    sq, ab = jax.block_until_ready((sq, ab))
    d = _gram_ref(xf) - tgt
    assert jnp.allclose(sq, jnp.sum(d * d), rtol=1e-4, atol=1e-5), sq
    assert jnp.allclose(ab, jnp.sum(jnp.abs(d)), rtol=1e-4, atol=1e-5), ab

    print("KERNEL_OK")
</pallas_src>

<mosaic_0001>
module attributes {stable_mosaic.version = 11 : i64} {
  func.func @_gram_partial_kernel(%arg0: i32, %arg1: i32, %arg2: i32, %arg3: memref<1x4x256xf32, #tpu.memory_space<vmem>>, %arg4: memref<1x1x4x4xf32, #tpu.memory_space<vmem>>) attributes {dimension_semantics = [#tpu.dimension_semantics<parallel>, #tpu.dimension_semantics<parallel>, #tpu.dimension_semantics<arbitrary>], iteration_bounds = array<i64: 1, 2, 1>, scalar_prefetch = 0 : i64, scratch_operands = 0 : i64, tpu.core_type = #tpu.core_type<tc>, window_params = [{transform_indices = @transform_0, window_bounds = array<i64: 1, 4, 256>}, {transform_indices = @transform_1, window_bounds = array<i64: 1, 1, 4, 4>}]} {
    %c0_i32 = arith.constant 0 : i32
    %0 = arith.cmpi eq, %arg2, %c0_i32 : i32
    %1 = arith.extui %0 : i1 to i32
    %c0_i32_0 = arith.constant 0 : i32
    %2 = arith.cmpi ne, %1, %c0_i32_0 : i32
    scf.if %2 {
      %cst_11 = arith.constant 0.000000e+00 : f32
      %10 = vector.broadcast %cst_11 : f32 to vector<1x1x4x4xf32>
      %c0_12 = arith.constant 0 : index
      %c0_13 = arith.constant 0 : index
      %c0_14 = arith.constant 0 : index
      %c0_15 = arith.constant 0 : index
      %11 = vector.load %arg4[%c0_12, %c0_13, %c0_14, %c0_15] : memref<1x1x4x4xf32, #tpu.memory_space<vmem>>, vector<1x1x4x4xf32>
      tpu.vector_store %arg4[%c0_12, %c0_13, %c0_14, %c0_15], %10 {strides = array<i32>} : memref<1x1x4x4xf32, #tpu.memory_space<vmem>>, vector<1x1x4x4xf32>,
    } else {
    }
    %c0 = arith.constant 0 : index
    %c0_1 = arith.constant 0 : index
    %c0_2 = arith.constant 0 : index
    %3 = vector.load %arg3[%c0, %c0_1, %c0_2] : memref<1x4x256xf32, #tpu.memory_space<vmem>>, vector<1x4x256xf32>
    %4 = vector.shape_cast %3 : vector<1x4x256xf32> to vector<4x256xf32>
    %cst = arith.constant dense<0.000000e+00> : vector<4x4xf32>
    %5 = tpu.matmul %4, %4, %cst {dimension_numbers = #tpu.dot_dimension_numbers<[1], [1], [0], [0], [0, 0, 1, 0], [], []>} : vector<4x256xf32>, vector<4x256xf32>, vector<4x4xf32> -> vector<4x4xf32>
    %c0_3 = arith.constant 0 : index
    %c0_4 = arith.constant 0 : index
    %c0_5 = arith.constant 0 : index
    %c0_6 = arith.constant 0 : index
    %6 = vector.load %arg4[%c0_3, %c0_4, %c0_5, %c0_6] : memref<1x1x4x4xf32, #tpu.memory_space<vmem>>, vector<1x1x4x4xf32>
    %7 = vector.shape_cast %5 : vector<4x4xf32> to vector<1x1x4x4xf32>
    %8 = arith.addf %6, %7 : vector<1x1x4x4xf32>
    %c0_7 = arith.constant 0 : index
    %c0_8 = arith.constant 0 : index
    %c0_9 = arith.constant 0 : index
    %c0_10 = arith.constant 0 : index
    %9 = vector.load %arg4[%c0_7, %c0_8, %c0_9, %c0_10] : memref<1x1x4x4xf32, #tpu.memory_space<vmem>>, vector<1x1x4x4xf32>
    tpu.vector_store %arg4[%c0_7, %c0_8, %c0_9, %c0_10], %8 {strides = array<i32>} : memref<1x1x4x4xf32, #tpu.memory_space<vmem>>, vector<1x1x4x4xf32>,
    return
  }
  func.func @transform_0(%arg0: i32, %arg1: i32, %arg2: i32) -> (i32, i32, i32) {
    %c1_i32 = arith.constant 1 : i32
    %0 = arith.muli %arg0, %c1_i32 : i32
    %1 = arith.addi %0, %arg2 : i32
    %c0_i32 = arith.constant 0 : i32
    %2 = arith.minsi %1, %c0_i32 : i32
    %c0_i32_0 = arith.constant 0 : i32
    %c0_i32_1 = arith.constant 0 : i32
    return %arg1, %c0_i32_0, %2 : i32, i32, i32
  }
  func.func @transform_1(%arg0: i32, %arg1: i32, %arg2: i32) -> (i32, i32, i32, i32) {
    %c0_i32 = arith.constant 0 : i32
    %c0_i32_0 = arith.constant 0 : i32
    %c0_i32_1 = arith.constant 0 : i32
    return %arg0, %arg1, %c0_i32, %c0_i32_0 : i32, i32, i32, i32
  }
}

</mosaic_0001>

<llo_original>
// kernel: tpu_custom_call.1
$region0: #{tpu_custom_call.1}
  #allocation0 [shape = 'u32[]', space=smem, size = 0x4, offset = 0x4, fixed_abs, tag = 'smem constant byte address 0x4 - core index']
  #allocation1 [shape = 'u32[72,128]{1,0:T(1,128)}', space=vmem, size = 0x9000, scoped, tag = 'internal scratch']
  %s0 = inlined_call_operand.hbm [shape: f32[2,4,256], index: 0, kind: input, shape index: {}]
  %s1 = inlined_call_operand.hbm [shape: f32[1,2,4,4], index: 1, kind: output, shape index: {}]
  %s2 = sld [smem:[#allocation0]]
  $region45: #{tpu_custom_call.1} parent=0
    _
  %s4 = ssub.s32 1, %s2
  %s5 = scalar_select 0, %s4, %s2
  $region1: #{tpu_custom_call.1} parent=0
    #allocation2 [shape = 'u8[8192]{0}', space=vmem, size = 0x2000, scoped, tag = 'input window, operand 0']
    #allocation3 [shape = 's32[2]{0}', space=sflag, size = 0x8, scoped, tag = 'scoped memory for tpu_custom_call.1']
    #allocation4 [shape = 's32[2]{0}', space=sflag, size = 0x8, scoped, tag = 'scoped memory for tpu_custom_call.1']
    #allocation5 [shape = 'u8[4096]{0}', space=vmem, size = 0x1000, scoped, tag = 'output window, operand 0']
    %6 = vsyncpa [#allocation3], 0
    %s7 = scalar_lea.sflag [#allocation3], 1
    %8 = vsyncpa %s7, 0
    %9 = vsyncpa [#allocation4], 0
    %s10 = scalar_lea.sflag [#allocation4], 1
    %11 = vsyncpa %s10, 0
    loop: start=0, step=1, limit=4
    $region2: #{tpu_custom_call.1} parent=1 // loop_pre_header
      _
    $region3: #{tpu_custom_call.1} parent=1 // loop_header
      %s13 = sphi 0, %s17
      %p14 = scmp.ge.s32.totalorder %s13, 4
      %s20 = sphi 0, %s39
      %s21 = sphi 0, %s35
      %s22 = sphi 0, %s31
      %s23 = sphi 0, %s20
      %s24 = sphi 0, %s21
      %s25 = sphi 0, %s22
      %s26 = sphi 0, %s23
      %s27 = sphi 0, %s24
      %s28 = sphi 0, %s25
      %s50 = sphi 0, %s52
      %s53 = sphi 0, %s50
      %s54 = sphi 0, %s53
      %s70 = sphi 0, %s54
      %s78 = sphi 0, %s80
      %s81 = sphi 0, %s78
      %s82 = sphi 0, %s81
      %s98 = sphi 0, %s82
    $region4: #{tpu_custom_call.1} parent=1 // loop_header_branch
      %16 = sbr.rel (%p14) target = $region8
    $region5: #{tpu_custom_call.1} parent=1 // loop_body
      %s18 = ssub.s32 %s13, 1
      %s19 = ssub.s32 %s13, 2
      %s29 = sadd.s32 1, %s22
      %p30 = scmp.ge.s32.totalorder %s29, 1
      %s31 = scalar_select %p30, 0, %s29
      %s32 = sadd.s32 1, %s21
      %s33 = scalar_select %p30, %s32, %s21
      %p34 = scmp.ge.s32.totalorder %s33, 2
      %s35 = scalar_select %p34, 0, %s33
      %s36 = sadd.s32 1, %s20
      %s37 = scalar_select %p34, %s36, %s20
      %p38 = scmp.ge.s32.totalorder %s37, 1
      %s39 = scalar_select %p38, 0, %s37
      %s40 = sadd.s32 %s20, %s22
      %p41 = scmp.lt.s32.totalorder %s40, 0
      %s42 = scalar_select %p41, %s40, 0
      %s43 = sadd.s32 %s39, %s31
      %p44 = scmp.lt.s32.totalorder %s43, 0
      %s45 = scalar_select %p44, %s43, 0
      %s46 = ssub.s32 %s21, %s35
      %s47 = ssub.s32 %s42, %s45
      %s48 = sor.u32 %s46, %s47
      %p49 = scmp.eq.s32.totalorder %s48, 0
      %s51 = sadd.s32 %s50, 1
      %s52 = scalar_select %p49, %s50, %s51
      %p55 = pneg %p49
      %p56 = scmp.eq.s32.totalorder %s13, 1
      %p57 = por %p55, %p56
      %p58 = scmp.ne.s32.totalorder %s50, %s53
      %p59 = scmp.eq.s32.totalorder %s13, 0
      %p60 = por %p58, %p59
      %p61 = scmp.ne.s32.totalorder %s50, %s53
      %p62 = scmp.eq.s32.totalorder %s18, 1
      %p63 = por %p61, %p62
      %p64 = scmp.ne.s32.totalorder %s53, %s54
      %p65 = scmp.eq.s32.totalorder %s18, 0
      %p66 = por %p64, %p65
      %p67 = scmp.ne.s32.totalorder %s53, %s54
      %p68 = scmp.eq.s32.totalorder %s19, 1
      %p69 = por %p67, %p68
      %p71 = scmp.ne.s32.totalorder %s54, %s70
      %p72 = scmp.eq.s32.totalorder %s19, 0
      %p73 = por %p71, %p72
      %s74 = ssub.s32 %s20, %s39
      %s75 = ssub.s32 %s21, %s35
      %s76 = sor.u32 %s74, %s75
      %p77 = scmp.eq.s32.totalorder %s76, 0
      %s79 = sadd.s32 %s78, 1
      %s80 = scalar_select %p77, %s78, %s79
      %p83 = pneg %p77
      %p84 = scmp.eq.s32.totalorder %s13, 1
      %p85 = por %p83, %p84
      %p86 = scmp.ne.s32.totalorder %s78, %s81
      %p87 = scmp.eq.s32.totalorder %s13, 0
      %p88 = por %p86, %p87
      %p89 = scmp.ne.s32.totalorder %s78, %s81
      %p90 = scmp.eq.s32.totalorder %s18, 1
      %p91 = por %p89, %p90
      %p92 = scmp.ne.s32.totalorder %s81, %s82
      %p93 = scmp.eq.s32.totalorder %s18, 0
      %p94 = por %p92, %p93
      %p95 = scmp.ne.s32.totalorder %s81, %s82
      %p96 = scmp.eq.s32.totalorder %s19, 1
      %p97 = por %p95, %p96
      %p99 = scmp.ne.s32.totalorder %s82, %s98
      %p100 = scmp.eq.s32.totalorder %s19, 0
      %p101 = por %p99, %p100
      %p102 = scmp.le.s32.totalorder 1, %s13
      %p103 = scmp.lt.s32.totalorder %s13, 3
      %p104 = pnand %p102, %p103
      %p105 = pneg %p104
      // Predicated region
      $region9: #{tpu_custom_call.1} parent=5 // pred_check
        _
      $region10: #{tpu_custom_call.1} parent=5 // pred_check_branch
        %107 = sbr.rel (%p104) target = $region12
      $region11: #{tpu_custom_call.1} parent=5 // pred_region
        %s108 = ssub.s32 %s13, 1
      $region12: #{tpu_custom_call.1} parent=5 // pred_fallthru
        _
      %p109 = scmp.lt.s32.totalorder %s13, 2
      // Predicated region
      $region13: #{tpu_custom_call.1} parent=5 // pred_check
        %p110 = pneg %p109
      $region14: #{tpu_custom_call.1} parent=5 // pred_check_branch
        %112 = sbr.rel (%p110) target = $region16
      $region15: #{tpu_custom_call.1} parent=5 // pred_region
        // Predicated region
        $region17: #{tpu_custom_call.1} parent=15 // pred_check
          %p113 = pneg %p60
        $region18: #{tpu_custom_call.1} parent=15 // pred_check_branch
          %115 = sbr.rel (%p113) target = $region20
        $region19: #{tpu_custom_call.1} parent=15 // pred_region
          %s116 = sand.u32 %s50, 1
          %s117 = scalar_lea.sflag [#allocation3], %s116
          %s118 = sand.u32 %s50, 1
          %s119 = smul.addr %s118, 8
          %s120 = scalar_lea.vmem [#allocation2], %s119
          %s121 = sadd.s32 %s20, %s22
          %p122 = scmp.lt.s32.totalorder %s121, 0
          %s123 = scalar_select %p122, %s121, 0
          %s124 = smul.u32 2, %s123
          %126 = vsyncadd %s117, 0
          %s127 = smul.addr %s21, 2
          %s128 = sadd.s32 %s124, %s127
          %s129 = smul.addr %s128, 4
          %s130 = scalar_lea.hbm %s0, %s129
          %s132 = sshll.u32 %s130, 4
          %s133 = int_to_ptr.hbm [resolvable:$true] %s132
          %s134 = sshll.u32 %s120, 4
          %s135 = int_to_ptr.vmem [resolvable:$true] %s134
          %137 = dma.hbm_to_vmem [thread:$0]  %s133, 128, %s135, %s117
        $region20: #{tpu_custom_call.1} parent=15 // pred_fallthru
          _
      $region16: #{tpu_custom_call.1} parent=5 // pred_fallthru
        _
      %p138 = scmp.le.s32.totalorder 1, %s13
      %p139 = scmp.lt.s32.totalorder %s13, 3
      %p140 = pnand %p138, %p139
      %p141 = pneg %p140
      // Predicated region
      $region21: #{tpu_custom_call.1} parent=5 // pred_check
        _
      $region22: #{tpu_custom_call.1} parent=5 // pred_check_branch
        %143 = sbr.rel (%p140) target = $region24
      $region23: #{tpu_custom_call.1} parent=5 // pred_region
        %s144 = ssub.s32 %s13, 1
        %s145 = sand.u32 %s53, 1
        %s146 = scalar_lea.sflag [#allocation3], %s145
        %s147 = sand.u32 %s53, 1
        %s148 = smul.addr %s147, 8
        %s149 = scalar_lea.vmem [#allocation2], %s148
        // Predicated region
        $region25: #{tpu_custom_call.1} parent=23 // pred_check
          %p150 = pneg %p66
        $region26: #{tpu_custom_call.1} parent=23 // pred_check_branch
          %152 = sbr.rel (%p150) target = $region28
        $region27: #{tpu_custom_call.1} parent=23 // pred_region
          %154 = dma.done %s146, 128
        $region28: #{tpu_custom_call.1} parent=23 // pred_fallthru
          _
        %s155 = sand.u32 %s53, 1
        %s156 = scalar_lea.sflag [#allocation3], %s155
        %s157 = sand.u32 %s53, 1
        %s158 = smul.addr %s157, 8
        %s159 = scalar_lea.vmem [#allocation2], %s158
        %p160 = pneg %p66
        %p161 = pneg %p63
        %p162 = pneg %p94
        %p163 = pneg %p91
        %s164 = sand.u32 %s81, 1
        %s165 = scalar_lea.sflag [#allocation4], %s164
        %s166 = sand.u32 %s81, 1
        %s167 = smul.addr %s166, 4
        %s168 = scalar_lea.vmem [#allocation5], %s167
        %s169 = sadd.s32 %s23, %s25
        %p170 = scmp.lt.s32.totalorder %s169, 0
        %s171 = scalar_select %p170, %s169, 0
        %s172 = smul.u32 2, %s171
        %p173 = scmp.eq.s32.totalorder %s25, 0
        // Predicated region
        $region29: #{tpu_custom_call.1} parent=23 // pred_check
          %p174 = pneg %p173
        $region30: #{tpu_custom_call.1} parent=23 // pred_check_branch
          %176 = sbr.rel (%p174) target = $region32
        $region31: #{tpu_custom_call.1} parent=23 // pred_region
          %vm177 = vcmask 27648
          %178 = vst.msk [vmem:[%s168] sm:$0xf] %vm177, 0.0
        $region32: #{tpu_custom_call.1} parent=23 // pred_fallthru
          _
        %v179 = vld [vmem:[%s149] sm:$0xff]
        %181 = vst [vmem:[#allocation1] ss:$2 sm:$0xff] %v179
        %v182 = vld.sshfl [vmem:[#allocation1] sm:$0xff pattern:$0x75316420]
        %v183 = vld.sshfl [vmem:[#allocation1 + $0x8] sm:$0xff pattern:$0x75316420]
        %186 = vst [vmem:[#allocation1] ss:$2 sm:$0xff] %v179
        %v187 = vld.sshfl [vmem:[#allocation1] sm:$0xff pattern:$0x75316420]
        %v188 = vld.sshfl [vmem:[#allocation1 + $0x8] sm:$0xff pattern:$0x75316420]
        %191 = vmatpush.xpose.msra.mxu0 0.0
        %192 = vmatpush.xpose.msra.mxu0 0.0
        %193 = vmatpush.xpose.msra.mxu0 0.0
        %194 = vmatpush.xpose.msra.mxu0 0.0
        %195 = vmatpush.xpose.msra.mxu0 0.0
        %196 = vmatpush.xpose.msra.mxu0 0.0
        %197 = vmatpush.xpose.msra.mxu0 0.0
        %198 = vmatpush.xpose.msra.mxu0 0.0
        %199 = vmatpush.xpose.msra.mxu0 0.0
        %200 = vmatpush.xpose.msra.mxu0 0.0
        %201 = vmatpush.xpose.msra.mxu0 0.0
        %202 = vmatpush.xpose.msra.mxu0 0.0
        %203 = vmatpush.xpose.msra.mxu0 0.0
        %204 = vmatpush.xpose.msra.mxu0 0.0
        %205 = vmatpush.xpose.msra.mxu0 0.0
        %206 = vmatpush.xpose.msra.mxu0 %v187
        %207 = vmatmul.f32.gmra.mxu0 %v182
        %v208 = vpop.f32.mrf.mxu0
        %v209 = vadd.f32 0.0, %v208
        %210 = vdwg.mxu0
        %211 = vmatpush.xpose.msra.mxu0 0.0
        %212 = vmatpush.xpose.msra.mxu0 0.0
        %213 = vmatpush.xpose.msra.mxu0 0.0
        %214 = vmatpush.xpose.msra.mxu0 0.0
        %215 = vmatpush.xpose.msra.mxu0 0.0
        %216 = vmatpush.xpose.msra.mxu0 0.0
        %217 = vmatpush.xpose.msra.mxu0 0.0
        %218 = vmatpush.xpose.msra.mxu0 0.0
        %219 = vmatpush.xpose.msra.mxu0 0.0
        %220 = vmatpush.xpose.msra.mxu0 0.0
        %221 = vmatpush.xpose.msra.mxu0 0.0
        %222 = vmatpush.xpose.msra.mxu0 0.0
        %223 = vmatpush.xpose.msra.mxu0 0.0
        %224 = vmatpush.xpose.msra.mxu0 0.0
        %225 = vmatpush.xpose.msra.mxu0 0.0
        %226 = vmatpush.xpose.msra.mxu0 %v188
        %227 = vmatmul.f32.gmra.mxu0 %v183
        %v228 = vpop.f32.mrf.mxu0
        %v229 = vadd.f32 %v209, %v228
        %230 = vdwg.mxu0
        %v231 = vld [vmem:[%s168] sm:$0xf]
        %v232 = vadd.f32 %v231, %v229
        %vm233 = vcmask 27648
        %234 = vst.msk [vmem:[%s168] sm:$0xf] %vm233, %v232
        %s235 = sand.u32 %s81, 1
        %s236 = scalar_lea.sflag [#allocation4], %s235
        %s237 = sand.u32 %s81, 1
        %s238 = smul.addr %s237, 4
        %s239 = scalar_lea.vmem [#allocation5], %s238
        // Predicated region
        $region33: #{tpu_custom_call.1} parent=23 // pred_check
          %p240 = pneg %p91
        $region34: #{tpu_custom_call.1} parent=23 // pred_check_branch
          %242 = sbr.rel (%p240) target = $region36
        $region35: #{tpu_custom_call.1} parent=23 // pred_region
          %244 = vsyncadd %s236, 0
          %s245 = smul.addr %s23, 2
          %s246 = sadd.s32 %s24, %s245
          %s247 = smul.addr %s246, 4
          %s248 = scalar_lea.hbm %s1, %s247
          %s250 = sshll.u32 %s239, 4
          %s251 = int_to_ptr.vmem [resolvable:$true] %s250
          %s252 = sshll.u32 %s248, 4
          %s253 = int_to_ptr.hbm [resolvable:$true] %s252
          %255 = dma.vmem_to_hbm [thread:$0]  %s251, 64, %s253, %s236
        $region36: #{tpu_custom_call.1} parent=23 // pred_fallthru
          _
      $region24: #{tpu_custom_call.1} parent=5 // pred_fallthru
        _
      %p256 = scmp.le.s32.totalorder 2, %s13
      // Predicated region
      $region37: #{tpu_custom_call.1} parent=5 // pred_check
        %p257 = pneg %p256
      $region38: #{tpu_custom_call.1} parent=5 // pred_check_branch
        %259 = sbr.rel (%p257) target = $region40
      $region39: #{tpu_custom_call.1} parent=5 // pred_region
        %s260 = ssub.s32 %s13, 2
        // Predicated region
        $region41: #{tpu_custom_call.1} parent=39 // pred_check
          %p261 = pneg %p97
        $region42: #{tpu_custom_call.1} parent=39 // pred_check_branch
          %263 = sbr.rel (%p261) target = $region44
        $region43: #{tpu_custom_call.1} parent=39 // pred_region
          %s264 = sand.u32 %s82, 1
          %s265 = scalar_lea.sflag [#allocation4], %s264
          %s266 = sand.u32 %s82, 1
          %s267 = smul.addr %s266, 4
          %s268 = scalar_lea.vmem [#allocation5], %s267
          %270 = dma.done %s265, 64
        $region44: #{tpu_custom_call.1} parent=39 // pred_fallthru
          _
      $region40: #{tpu_custom_call.1} parent=5 // pred_fallthru
        _
    $region6: #{tpu_custom_call.1} parent=1 // loop_footer
      %s17 = sadd.s32 1, %s13
    $region7: #{tpu_custom_call.1} parent=1 // loop_footer_branch
      %12 = sbr.rel target = $region3
    $region8: #{tpu_custom_call.1} parent=1 // loop_exit
      _
    %271 = vsyncpa [#allocation3], 1
    %s272 = scalar_lea.sflag [#allocation3], 1
    %273 = vsyncpa %s272, 1
    %274 = vsyncpa [#allocation4], 1
    %s275 = scalar_lea.sflag [#allocation4], 1
    %276 = vsyncpa %s275, 1

</llo_original>
